<compile_context>
chip_gen: v7x
topology: tpu7x:2x2x1
jax: 0.10.0
libtpu: 0.0.40
codegen_flags: <defaults>
</compile_context>

<pallas_src>
import functools

import jax
import jax.numpy as jnp
from jax.experimental import pallas as pl
from jax.experimental.pallas import tpu as pltpu


def rnn_kernel(xw_ref, whh_ref, wout_ref, bout_ref, out_ref, *, n_classes):
    """Full recurrence + output head in one invocation.

    xw_ref   : (seq_len, batch, h)  precomputed x_t @ W_ih^T + (b_ih + b_hh)
    whh_ref  : (h, h)               W_hh^T
    wout_ref : (h, 128)             W_out^T zero-padded to 128 lanes
    bout_ref : (1, 128)             b_out zero-padded to 128 lanes
    out_ref  : (batch, 128)         log-softmax output (first n_classes lanes valid)
    """
    seq_len, batch, hdim = xw_ref.shape
    whh = whh_ref[...]  # keep W_hh^T resident in vregs across all steps

    def step(t, carry):
        h_prev, h_sum = carry
        # h_t = tanh(h_{t-1} @ W_hh^T + (x_t @ W_ih^T + b_ih + b_hh))
        h_new = jnp.tanh(
            jnp.dot(h_prev, whh, preferred_element_type=jnp.float32) + xw_ref[t]
        )
        return h_new, h_sum + h_new

    zeros = jnp.zeros((batch, hdim), jnp.float32)
    _, h_sum = jax.lax.fori_loop(0, seq_len, step, (zeros, zeros), unroll=True)

    # sum_t (h_t @ W_out^T + b_out) == (sum_t h_t) @ W_out^T + seq_len * b_out
    s = (
        jnp.dot(h_sum, wout_ref[...], preferred_element_type=jnp.float32)
        + bout_ref[...] * float(seq_len)
    )

    # Numerically stable log-softmax restricted to the first n_classes lanes.
    col = jax.lax.broadcasted_iota(jnp.int32, s.shape, 1)
    valid = col < n_classes
    s_masked = jnp.where(valid, s, -1e30)                       # exclude padded lanes
    m = jnp.max(s_masked, axis=1, keepdims=True)
    e = jnp.exp(s_masked - m)                                   # padded lanes -> 0
    lse = jnp.log(jnp.sum(e, axis=1, keepdims=True)) + m
    out_ref[...] = (s - lse).astype(out_ref.dtype)              # padded lanes: garbage, sliced off


def rnn_forward(token_ids, embedding, w_ih, w_hh, b_ih, b_hh, w_out, b_out):
    """token_ids: (seq_len, batch) int32 -> (batch, 5) log-probs."""
    # Embedding lookup (frozen pretrained embeddings) -- glue, plain JAX gather.
    embedded = embedding[token_ids].astype(jnp.float32)   # (seq, batch, embed)
    seq_len, batch, embed_dim = embedded.shape
    hdim = w_hh.shape[0]
    n_out = w_out.shape[0]
    n_pad = 128  # lane-dense output width

    # Hoist the input projection out of the serial recurrence: one big matmul.
    bias = (b_ih + b_hh).astype(jnp.float32)
    xw = (
        embedded.reshape(seq_len * batch, embed_dim) @ w_ih.T.astype(jnp.float32)
        + bias
    ).reshape(seq_len, batch, hdim)

    whh_t = jnp.asarray(w_hh.T, jnp.float32)               # (h, h)

    # Lane-dense (128-padded) output head weights.
    wout_t = jnp.zeros((hdim, n_pad), jnp.float32).at[:, :n_out].set(
        w_out.T.astype(jnp.float32)
    )
    bout = jnp.zeros((1, n_pad), jnp.float32).at[:, :n_out].set(
        b_out.astype(jnp.float32)
    )

    kernel = functools.partial(rnn_kernel, n_classes=n_out)

    out_padded = pl.pallas_call(
        kernel,
        out_shape=jax.ShapeDtypeStruct((batch, n_pad), jnp.float32),
        grid_spec=pltpu.PrefetchScalarGridSpec(
            num_scalar_prefetch=0,
            grid=(1,),  # single invocation; recurrence lives inside the kernel
            in_specs=[
                pl.BlockSpec((seq_len, batch, hdim), lambda i: (0, 0, 0)),
                pl.BlockSpec((hdim, hdim), lambda i: (0, 0)),
                pl.BlockSpec((hdim, n_pad), lambda i: (0, 0)),
                pl.BlockSpec((1, n_pad), lambda i: (0, 0)),
            ],
            out_specs=pl.BlockSpec((batch, n_pad), lambda i: (0, 0)),
        ),
        compiler_params=pltpu.CompilerParams(
            dimension_semantics=("arbitrary",)
        ),
    )(xw, whh_t, wout_t, bout)

    return out_padded[:, :n_out]


def rnn_reference(token_ids, embedding, w_ih, w_hh, b_ih, b_hh, w_out, b_out):
    """Pure-JAX reference mirroring the PyTorch forward."""
    embedded = embedding[token_ids]  # (seq, batch, embed)
    seq_len, batch, _ = embedded.shape
    hdim = w_hh.shape[0]

    def step(h_prev, x_t):
        h_t = jnp.tanh(x_t @ w_ih.T + b_ih + h_prev @ w_hh.T + b_hh)
        return h_t, h_t

    h0 = jnp.zeros((batch, hdim), jnp.float32)
    _, rnn_out = jax.lax.scan(step, h0, embedded)           # (seq, batch, h)
    out_layer = rnn_out @ w_out.T + b_out                   # (seq, batch, 5)
    summed = out_layer.sum(axis=0)                          # (batch, 5)
    return jax.nn.log_softmax(summed, axis=1)


if __name__ == "__main__":
    # Small shapes consistent with the module.
    seq_len, batch = 8, 2
    vocab_size, embed_dim, hidden = 50, 32, 32
    n_classes = 5

    key = jax.random.PRNGKey(0)
    k_emb, k_ids, k_wih, k_whh, k_bih, k_bhh, k_w, k_b = jax.random.split(key, 8)

    # "pretrained_embeddings" (frozen) -- deterministic synthetic init.
    embedding = jax.random.normal(k_emb, (vocab_size, embed_dim), jnp.float32)

    # nn.RNN / nn.Linear default init: U(-1/sqrt(h), 1/sqrt(h)).
    bound = 1.0 / jnp.sqrt(hidden)
    w_ih = jax.random.uniform(k_wih, (hidden, embed_dim), jnp.float32, -bound, bound)
    w_hh = jax.random.uniform(k_whh, (hidden, hidden), jnp.float32, -bound, bound)
    b_ih = jax.random.uniform(k_bih, (hidden,), jnp.float32, -bound, bound)
    b_hh = jax.random.uniform(k_bhh, (hidden,), jnp.float32, -bound, bound)
    w_out = jax.random.uniform(k_w, (n_classes, hidden), jnp.float32, -bound, bound)
    b_out = jax.random.uniform(k_b, (n_classes,), jnp.float32, -bound, bound)

    token_ids = jax.random.randint(k_ids, (seq_len, batch), 0, vocab_size, jnp.int32)

    out = rnn_forward(token_ids, embedding, w_ih, w_hh, b_ih, b_hh, w_out, b_out)
    out = jax.block_until_ready(out)

    ref = rnn_reference(token_ids, embedding, w_ih, w_hh, b_ih, b_hh, w_out, b_out)
    assert out.shape == (batch, n_classes)
    assert jnp.allclose(out, ref, atol=1e-5, rtol=1e-5), (out, ref)

    print("KERNEL_OK")
</pallas_src>

<mosaic_0001>
module attributes {stable_mosaic.version = 11 : i64} {
  func.func @rnn_kernel(%arg0: i32, %arg1: memref<8x2x32xf32, #tpu.memory_space<vmem>>, %arg2: memref<32x32xf32, #tpu.memory_space<vmem>>, %arg3: memref<32x128xf32, #tpu.memory_space<vmem>>, %arg4: memref<1x128xf32, #tpu.memory_space<vmem>>, %arg5: memref<2x128xf32, #tpu.memory_space<vmem>>) attributes {dimension_semantics = [#tpu.dimension_semantics<arbitrary>], iteration_bounds = array<i64: 1>, scalar_prefetch = 0 : i64, scratch_operands = 0 : i64, tpu.core_type = #tpu.core_type<tc>, window_params = [{pipeline_mode = #tpu.pipeline_mode<synchronous>, transform_indices = @transform_0, window_bounds = array<i64: 8, 2, 32>}, {pipeline_mode = #tpu.pipeline_mode<synchronous>, transform_indices = @transform_1, window_bounds = array<i64: 32, 32>}, {pipeline_mode = #tpu.pipeline_mode<synchronous>, transform_indices = @transform_2, window_bounds = array<i64: 32, 128>}, {pipeline_mode = #tpu.pipeline_mode<synchronous>, transform_indices = @transform_3, window_bounds = array<i64: 1, 128>}, {pipeline_mode = #tpu.pipeline_mode<synchronous>, transform_indices = @transform_4, window_bounds = array<i64: 2, 128>}]} {
    %c0 = arith.constant 0 : index
    %c0_0 = arith.constant 0 : index
    %0 = vector.load %arg2[%c0, %c0_0] : memref<32x32xf32, #tpu.memory_space<vmem>>, vector<32x32xf32>
    %cst = arith.constant 0.000000e+00 : f32
    %1 = vector.broadcast %cst : f32 to vector<2x32xf32>
    %c0_i32 = arith.constant 0 : i32
    %cst_1 = arith.constant dense<0.000000e+00> : vector<2x32xf32>
    %2 = tpu.matmul %1, %0, %cst_1 {dimension_numbers = #tpu.dot_dimension_numbers<[1], [0], [0], [1], [0, 0, 1, 1], [], []>} : vector<2x32xf32>, vector<32x32xf32>, vector<2x32xf32> -> vector<2x32xf32>
    %3 = arith.index_cast %c0_i32 : i32 to index
    %c0_2 = arith.constant 0 : index
    %c0_3 = arith.constant 0 : index
    %4 = vector.load %arg1[%3, %c0_2, %c0_3] : memref<8x2x32xf32, #tpu.memory_space<vmem>>, vector<1x2x32xf32>
    %5 = vector.shape_cast %4 : vector<1x2x32xf32> to vector<2x32xf32>
    %6 = arith.addf %2, %5 : vector<2x32xf32>
    %7 = math.tanh %6 : vector<2x32xf32>
    %8 = arith.addf %1, %7 : vector<2x32xf32>
    %c1_i32 = arith.constant 1 : i32
    %cst_4 = arith.constant dense<0.000000e+00> : vector<2x32xf32>
    %9 = tpu.matmul %7, %0, %cst_4 {dimension_numbers = #tpu.dot_dimension_numbers<[1], [0], [0], [1], [0, 0, 1, 1], [], []>} : vector<2x32xf32>, vector<32x32xf32>, vector<2x32xf32> -> vector<2x32xf32>
    %10 = arith.index_cast %c1_i32 : i32 to index
    %c0_5 = arith.constant 0 : index
    %c0_6 = arith.constant 0 : index
    %11 = vector.load %arg1[%10, %c0_5, %c0_6] : memref<8x2x32xf32, #tpu.memory_space<vmem>>, vector<1x2x32xf32>
    %12 = vector.shape_cast %11 : vector<1x2x32xf32> to vector<2x32xf32>
    %13 = arith.addf %9, %12 : vector<2x32xf32>
    %14 = math.tanh %13 : vector<2x32xf32>
    %15 = arith.addf %8, %14 : vector<2x32xf32>
    %c2_i32 = arith.constant 2 : i32
    %cst_7 = arith.constant dense<0.000000e+00> : vector<2x32xf32>
    %16 = tpu.matmul %14, %0, %cst_7 {dimension_numbers = #tpu.dot_dimension_numbers<[1], [0], [0], [1], [0, 0, 1, 1], [], []>} : vector<2x32xf32>, vector<32x32xf32>, vector<2x32xf32> -> vector<2x32xf32>
    %17 = arith.index_cast %c2_i32 : i32 to index
    %c0_8 = arith.constant 0 : index
    %c0_9 = arith.constant 0 : index
    %18 = vector.load %arg1[%17, %c0_8, %c0_9] : memref<8x2x32xf32, #tpu.memory_space<vmem>>, vector<1x2x32xf32>
    %19 = vector.shape_cast %18 : vector<1x2x32xf32> to vector<2x32xf32>
    %20 = arith.addf %16, %19 : vector<2x32xf32>
    %21 = math.tanh %20 : vector<2x32xf32>
    %22 = arith.addf %15, %21 : vector<2x32xf32>
    %c3_i32 = arith.constant 3 : i32
    %cst_10 = arith.constant dense<0.000000e+00> : vector<2x32xf32>
    %23 = tpu.matmul %21, %0, %cst_10 {dimension_numbers = #tpu.dot_dimension_numbers<[1], [0], [0], [1], [0, 0, 1, 1], [], []>} : vector<2x32xf32>, vector<32x32xf32>, vector<2x32xf32> -> vector<2x32xf32>
    %24 = arith.index_cast %c3_i32 : i32 to index
    %c0_11 = arith.constant 0 : index
    %c0_12 = arith.constant 0 : index
    %25 = vector.load %arg1[%24, %c0_11, %c0_12] : memref<8x2x32xf32, #tpu.memory_space<vmem>>, vector<1x2x32xf32>
    %26 = vector.shape_cast %25 : vector<1x2x32xf32> to vector<2x32xf32>
    %27 = arith.addf %23, %26 : vector<2x32xf32>
    %28 = math.tanh %27 : vector<2x32xf32>
    %29 = arith.addf %22, %28 : vector<2x32xf32>
    %c4_i32 = arith.constant 4 : i32
    %cst_13 = arith.constant dense<0.000000e+00> : vector<2x32xf32>
    %30 = tpu.matmul %28, %0, %cst_13 {dimension_numbers = #tpu.dot_dimension_numbers<[1], [0], [0], [1], [0, 0, 1, 1], [], []>} : vector<2x32xf32>, vector<32x32xf32>, vector<2x32xf32> -> vector<2x32xf32>
    %31 = arith.index_cast %c4_i32 : i32 to index
    %c0_14 = arith.constant 0 : index
    %c0_15 = arith.constant 0 : index
    %32 = vector.load %arg1[%31, %c0_14, %c0_15] : memref<8x2x32xf32, #tpu.memory_space<vmem>>, vector<1x2x32xf32>
    %33 = vector.shape_cast %32 : vector<1x2x32xf32> to vector<2x32xf32>
    %34 = arith.addf %30, %33 : vector<2x32xf32>
    %35 = math.tanh %34 : vector<2x32xf32>
    %36 = arith.addf %29, %35 : vector<2x32xf32>
    %c5_i32 = arith.constant 5 : i32
    %cst_16 = arith.constant dense<0.000000e+00> : vector<2x32xf32>
    %37 = tpu.matmul %35, %0, %cst_16 {dimension_numbers = #tpu.dot_dimension_numbers<[1], [0], [0], [1], [0, 0, 1, 1], [], []>} : vector<2x32xf32>, vector<32x32xf32>, vector<2x32xf32> -> vector<2x32xf32>
    %38 = arith.index_cast %c5_i32 : i32 to index
    %c0_17 = arith.constant 0 : index
    %c0_18 = arith.constant 0 : index
    %39 = vector.load %arg1[%38, %c0_17, %c0_18] : memref<8x2x32xf32, #tpu.memory_space<vmem>>, vector<1x2x32xf32>
    %40 = vector.shape_cast %39 : vector<1x2x32xf32> to vector<2x32xf32>
    %41 = arith.addf %37, %40 : vector<2x32xf32>
    %42 = math.tanh %41 : vector<2x32xf32>
    %43 = arith.addf %36, %42 : vector<2x32xf32>
    %c6_i32 = arith.constant 6 : i32
    %cst_19 = arith.constant dense<0.000000e+00> : vector<2x32xf32>
    %44 = tpu.matmul %42, %0, %cst_19 {dimension_numbers = #tpu.dot_dimension_numbers<[1], [0], [0], [1], [0, 0, 1, 1], [], []>} : vector<2x32xf32>, vector<32x32xf32>, vector<2x32xf32> -> vector<2x32xf32>
    %45 = arith.index_cast %c6_i32 : i32 to index
    %c0_20 = arith.constant 0 : index
    %c0_21 = arith.constant 0 : index
    %46 = vector.load %arg1[%45, %c0_20, %c0_21] : memref<8x2x32xf32, #tpu.memory_space<vmem>>, vector<1x2x32xf32>
    %47 = vector.shape_cast %46 : vector<1x2x32xf32> to vector<2x32xf32>
    %48 = arith.addf %44, %47 : vector<2x32xf32>
    %49 = math.tanh %48 : vector<2x32xf32>
    %50 = arith.addf %43, %49 : vector<2x32xf32>
    %c7_i32 = arith.constant 7 : i32
    %cst_22 = arith.constant dense<0.000000e+00> : vector<2x32xf32>
    %51 = tpu.matmul %49, %0, %cst_22 {dimension_numbers = #tpu.dot_dimension_numbers<[1], [0], [0], [1], [0, 0, 1, 1], [], []>} : vector<2x32xf32>, vector<32x32xf32>, vector<2x32xf32> -> vector<2x32xf32>
    %52 = arith.index_cast %c7_i32 : i32 to index
    %c0_23 = arith.constant 0 : index
    %c0_24 = arith.constant 0 : index
    %53 = vector.load %arg1[%52, %c0_23, %c0_24] : memref<8x2x32xf32, #tpu.memory_space<vmem>>, vector<1x2x32xf32>
    %54 = vector.shape_cast %53 : vector<1x2x32xf32> to vector<2x32xf32>
    %55 = arith.addf %51, %54 : vector<2x32xf32>
    %56 = math.tanh %55 : vector<2x32xf32>
    %57 = arith.addf %50, %56 : vector<2x32xf32>
    %c8_i32 = arith.constant 8 : i32
    %c0_25 = arith.constant 0 : index
    %c0_26 = arith.constant 0 : index
    %58 = vector.load %arg3[%c0_25, %c0_26] : memref<32x128xf32, #tpu.memory_space<vmem>>, vector<32x128xf32>
    %cst_27 = arith.constant dense<0.000000e+00> : vector<2x128xf32>
    %59 = tpu.matmul %57, %58, %cst_27 {dimension_numbers = #tpu.dot_dimension_numbers<[1], [0], [0], [1], [0, 0, 1, 1], [], []>} : vector<2x32xf32>, vector<32x128xf32>, vector<2x128xf32> -> vector<2x128xf32>
    %c0_28 = arith.constant 0 : index
    %c0_29 = arith.constant 0 : index
    %60 = vector.load %arg4[%c0_28, %c0_29] : memref<1x128xf32, #tpu.memory_space<vmem>>, vector<1x128xf32>
    %cst_30 = arith.constant 8.000000e+00 : f32
    %61 = vector.broadcast %cst_30 : f32 to vector<1x128xf32>
    %62 = arith.mulf %60, %61 : vector<1x128xf32>
    %63 = vector.broadcast %62 : vector<1x128xf32> to vector<2x128xf32>
    %64 = arith.addf %59, %63 : vector<2x128xf32>
    %65 = tpu.iota {dimensions = array<i32: 1>} : vector<2x128xi32>
    %c5_i32_31 = arith.constant 5 : i32
    %66 = vector.broadcast %c5_i32_31 : i32 to vector<2x128xi32>
    %67 = arith.cmpi slt, %65, %66 : vector<2x128xi32>
    %cst_32 = arith.constant -1.000000e+30 : f32
    %68 = vector.broadcast %cst_32 : f32 to vector<2x128xf32>
    %69 = arith.select %67, %64, %68 : vector<2x128xi1>, vector<2x128xf32>
    %cst_33 = arith.constant dense<0xFF800000> : vector<2xf32>
    %70 = vector.multi_reduction <maximumf>, %69, %cst_33 [1] : vector<2x128xf32> to vector<2xf32>
    %71 = vector.shape_cast %70 : vector<2xf32> to vector<2x1xf32>
    %72 = vector.broadcast %71 : vector<2x1xf32> to vector<2x128xf32>
    %73 = arith.subf %69, %72 : vector<2x128xf32>
    %74 = math.exp %73 : vector<2x128xf32>
    %cst_34 = arith.constant dense<0.000000e+00> : vector<2xf32>
    %75 = vector.multi_reduction <add>, %74, %cst_34 [1] : vector<2x128xf32> to vector<2xf32>
    %76 = vector.shape_cast %75 : vector<2xf32> to vector<2x1xf32>
    %77 = math.log %76 : vector<2x1xf32>
    %78 = arith.addf %77, %71 : vector<2x1xf32>
    %79 = vector.broadcast %78 : vector<2x1xf32> to vector<2x128xf32>
    %80 = arith.subf %64, %79 : vector<2x128xf32>
    %c0_35 = arith.constant 0 : index
    %c0_36 = arith.constant 0 : index
    %81 = vector.load %arg5[%c0_35, %c0_36] : memref<2x128xf32, #tpu.memory_space<vmem>>, vector<2x128xf32>
    tpu.vector_store %arg5[%c0_35, %c0_36], %80 {strides = array<i32>} : memref<2x128xf32, #tpu.memory_space<vmem>>, vector<2x128xf32>,
    return
  }
  func.func @transform_0(%arg0: i32) -> (i32, i32, i32) {
    %c0_i32 = arith.constant 0 : i32
    %c0_i32_0 = arith.constant 0 : i32
    %c0_i32_1 = arith.constant 0 : i32
    %c0_i32_2 = arith.constant 0 : i32
    return %c0_i32, %c0_i32_0, %c0_i32_1 : i32, i32, i32
  }
  func.func @transform_1(%arg0: i32) -> (i32, i32) {
    %c0_i32 = arith.constant 0 : i32
    %c0_i32_0 = arith.constant 0 : i32
    %c0_i32_1 = arith.constant 0 : i32
    return %c0_i32, %c0_i32_0 : i32, i32
  }
  func.func @transform_2(%arg0: i32) -> (i32, i32) {
    %c0_i32 = arith.constant 0 : i32
    %c0_i32_0 = arith.constant 0 : i32
    %c0_i32_1 = arith.constant 0 : i32
    return %c0_i32, %c0_i32_0 : i32, i32
  }
  func.func @transform_3(%arg0: i32) -> (i32, i32) {
    %c0_i32 = arith.constant 0 : i32
    %c0_i32_0 = arith.constant 0 : i32
    %c0_i32_1 = arith.constant 0 : i32
    return %c0_i32, %c0_i32_0 : i32, i32
  }
  func.func @transform_4(%arg0: i32) -> (i32, i32) {
    %c0_i32 = arith.constant 0 : i32
    %c0_i32_0 = arith.constant 0 : i32
    %c0_i32_1 = arith.constant 0 : i32
    return %c0_i32, %c0_i32_0 : i32, i32
  }
}

</mosaic_0001>

<llo_original>
// kernel: tpu_custom_call.1
$region0: #{tpu_custom_call.1}
  #allocation0 [shape = 'u32[]', space=smem, size = 0x4, offset = 0x4, fixed_abs, tag = 'smem constant byte address 0x4 - core index']
  #allocation1 [shape = 'u32[144,128]{1,0:T(1,128)}', space=vmem, size = 0x12000, scoped, tag = 'internal scratch']
  %s0 = inlined_call_operand.hbm [shape: f32[8,2,32], index: 0, kind: input, shape index: {}]
  %s1 = inlined_call_operand.hbm [shape: f32[32,32], index: 1, kind: input, shape index: {}]
  %s2 = inlined_call_operand.hbm [shape: f32[32,128], index: 2, kind: input, shape index: {}]
  %s3 = inlined_call_operand.vmem [shape: f32[1,128], index: 3, kind: input, shape index: {}]
  %s4 = inlined_call_operand.hbm [shape: f32[2,128], index: 4, kind: output, shape index: {}]
  %s5 = sld [smem:[#allocation0]]
  $region38: #{tpu_custom_call.1} parent=0
    _
  %s7 = ssub.s32 1, %s5
  %s8 = scalar_select 0, %s7, %s5
  $region1: #{tpu_custom_call.1} parent=0
    #allocation2 [shape = 'u8[8192]{0}', space=vmem, size = 0x2000, scoped, tag = 'input window, operand 0, single buffered']
    #allocation3 [shape = 's32[1]{0}', space=sflag, size = 0x4, scoped, tag = 'scoped memory for tpu_custom_call.1']
    #allocation4 [shape = 's32[1]{0}', space=sflag, size = 0x4, scoped, tag = 'scoped memory for tpu_custom_call.1']
    #allocation5 [shape = 'u8[16384]{0}', space=vmem, size = 0x4000, scoped, tag = 'input window, operand 1, single buffered']
    #allocation6 [shape = 's32[1]{0}', space=sflag, size = 0x4, scoped, tag = 'scoped memory for tpu_custom_call.1']
    #allocation7 [shape = 'u8[16384]{0}', space=vmem, size = 0x4000, scoped, tag = 'input window, operand 2, single buffered']
    #allocation8 [shape = 'u8[1024]{0}', space=vmem, size = 0x400, scoped, tag = 'output window, operand 0, single buffered']
    %9 = vsyncpa [#allocation3], 0
    %10 = vsyncpa [#allocation6], 0
    %11 = vsyncpa [#allocation4], 0
    // Predicated region
    $region2: #{tpu_custom_call.1} parent=1 // pred_check
      _
    $region3: #{tpu_custom_call.1} parent=1 // pred_check_branch
      %13 = sbr.rel (0) target = $region5
    $region4: #{tpu_custom_call.1} parent=1 // pred_region
      %s15 = ssub.s32 256, 256
      %16 = vsyncadd [#allocation3], %s15
      %s17 = sshll.u32 [#allocation2], 4
      %s18 = int_to_ptr.vmem [resolvable:$true] %s17
      %23 = dma.hbm_to_vmem [thread:$0]  %s0, 256, %s18, [#allocation3], 32, 32, 2
    $region5: #{tpu_custom_call.1} parent=1 // pred_fallthru
      _
    // Predicated region
    $region6: #{tpu_custom_call.1} parent=1 // pred_check
      _
    $region7: #{tpu_custom_call.1} parent=1 // pred_check_branch
      %25 = sbr.rel (0) target = $region9
    $region8: #{tpu_custom_call.1} parent=1 // pred_region
      %s27 = ssub.s32 512, 512
      %28 = vsyncadd [#allocation6], %s27
      %s29 = sshll.u32 [#allocation5], 4
      %s30 = int_to_ptr.vmem [resolvable:$true] %s29
      %35 = dma.hbm_to_vmem [thread:$0]  %s1, 512, %s30, [#allocation6], 128, 128, 8
    $region9: #{tpu_custom_call.1} parent=1 // pred_fallthru
      _
    // Predicated region
    $region10: #{tpu_custom_call.1} parent=1 // pred_check
      _
    $region11: #{tpu_custom_call.1} parent=1 // pred_check_branch
      %37 = sbr.rel (0) target = $region13
    $region12: #{tpu_custom_call.1} parent=1 // pred_region
      %s39 = ssub.s32 512, 512
      %40 = vsyncadd [#allocation6], %s39
      %s41 = sshll.u32 [#allocation7], 4
      %s42 = int_to_ptr.vmem [resolvable:$true] %s41
      %47 = dma.hbm_to_vmem [thread:$0]  %s2, 512, %s42, [#allocation6], 128, 128, 8
    $region13: #{tpu_custom_call.1} parent=1 // pred_fallthru
      _
    // Predicated region
    $region14: #{tpu_custom_call.1} parent=1 // pred_check
      _
    $region15: #{tpu_custom_call.1} parent=1 // pred_check_branch
      %49 = sbr.rel (0) target = $region17
    $region16: #{tpu_custom_call.1} parent=1 // pred_region
      _
    $region17: #{tpu_custom_call.1} parent=1 // pred_fallthru
      _
    // Predicated region
    $region18: #{tpu_custom_call.1} parent=1 // pred_check
      _
    $region19: #{tpu_custom_call.1} parent=1 // pred_check_branch
      %51 = sbr.rel (0) target = $region21
    $region20: #{tpu_custom_call.1} parent=1 // pred_region
      %52 = dma.done [#allocation3], 256
    $region21: #{tpu_custom_call.1} parent=1 // pred_fallthru
      _
    // Predicated region
    $region22: #{tpu_custom_call.1} parent=1 // pred_check
      _
    $region23: #{tpu_custom_call.1} parent=1 // pred_check_branch
      %54 = sbr.rel (0) target = $region25
    $region24: #{tpu_custom_call.1} parent=1 // pred_region
      %55 = dma.done [#allocation6], 512
    $region25: #{tpu_custom_call.1} parent=1 // pred_fallthru
      _
    // Predicated region
    $region26: #{tpu_custom_call.1} parent=1 // pred_check
      _
    $region27: #{tpu_custom_call.1} parent=1 // pred_check_branch
      %57 = sbr.rel (0) target = $region29
    $region28: #{tpu_custom_call.1} parent=1 // pred_region
      %58 = dma.done [#allocation6], 512
    $region29: #{tpu_custom_call.1} parent=1 // pred_fallthru
      _
    %v59 = vld [vmem:[#allocation5] sm:$0xff]
    %v60 = vld [vmem:[#allocation5 + $0x8] sm:$0xff]
    %v61 = vld [vmem:[#allocation5 + $0x10] sm:$0xff]
    %v62 = vld [vmem:[#allocation5 + $0x18] sm:$0xff]
    %v63 = vld [vmem:[#allocation2] sm:$0x3]
    %vm64 = vcmask 261120
    %v66 = vsel %vm64, 0.0, 0
    %68 = vmatprep.subr.mxu0 0.0
    %69 = vmatpush1.msra.mxu0 %v59
    %70 = vmatprep.subr.mxu0 0.0
    %71 = vmatpush1.msra.mxu0 %v60
    %72 = vmatprep.subr.mxu0 0.0
    %73 = vmatpush1.msra.mxu0 %v61
    %74 = vmatprep.subr.mxu0 0.0
    %75 = vmatpush1.msra.mxu0 %v62
    %76 = vmatprep.subr.mxu0 0.0
    %77 = vmatpush1.msra.mxu0 0.0
    %78 = vmatprep.subr.mxu0 0.0
    %79 = vmatpush1.msra.mxu0 0.0
    %80 = vmatprep.subr.mxu0 0.0
    %81 = vmatpush1.msra.mxu0 0.0
    %82 = vmatprep.subr.mxu0 0.0
    %83 = vmatpush1.msra.mxu0 0.0
    %84 = vmatprep.subr.mxu0 0.0
    %85 = vmatpush1.msra.mxu0 0.0
    %86 = vmatprep.subr.mxu0 0.0
    %87 = vmatpush1.msra.mxu0 0.0
    %88 = vmatprep.subr.mxu0 0.0
    %89 = vmatpush1.msra.mxu0 0.0
    %90 = vmatprep.subr.mxu0 0.0
    %91 = vmatpush1.msra.mxu0 0.0
    %92 = vmatprep.subr.mxu0 0.0
    %93 = vmatpush1.msra.mxu0 0.0
    %94 = vmatprep.subr.mxu0 0.0
    %95 = vmatpush1.msra.mxu0 0.0
    %96 = vmatprep.subr.mxu0 0.0
    %97 = vmatpush1.msra.mxu0 0.0
    %98 = vmatprep.subr.mxu0 0.0
    %99 = vmatpush1.msra.mxu0 0.0
    %100 = vmatprep.subr.mxu0 0.0
    %101 = vmatpush1.msra.mxu0 0.0
    %102 = vmatprep.subr.mxu0 0.0
    %103 = vmatpush1.msra.mxu0 0.0
    %104 = vmatprep.subr.mxu0 0.0
    %105 = vmatpush1.msra.mxu0 0.0
    %106 = vmatprep.subr.mxu0 0.0
    %107 = vmatpush1.msra.mxu0 0.0
    %108 = vmatprep.subr.mxu0 0.0
    %109 = vmatpush1.msra.mxu0 0.0
    %110 = vmatprep.subr.mxu0 0.0
    %111 = vmatpush1.msra.mxu0 0.0
    %112 = vmatprep.subr.mxu0 0.0
    %113 = vmatpush1.msra.mxu0 0.0
    %114 = vmatprep.subr.mxu0 0.0
    %115 = vmatpush1.msra.mxu0 0.0
    %116 = vmatprep.subr.mxu0 0.0
    %117 = vmatpush1.msra.mxu0 0.0
    %118 = vmatprep.subr.mxu0 0.0
    %119 = vmatpush1.msra.mxu0 0.0
    %120 = vmatprep.subr.mxu0 0.0
    %121 = vmatpush1.msra.mxu0 0.0
    %122 = vmatprep.subr.mxu0 0.0
    %123 = vmatpush1.msra.mxu0 0.0
    %124 = vmatprep.subr.mxu0 0.0
    %125 = vmatpush1.msra.mxu0 0.0
    %126 = vmatprep.subr.mxu0 0.0
    %127 = vmatpush1.msra.mxu0 0.0
    %128 = vmatprep.subr.mxu0 0.0
    %129 = vmatpush1.msra.mxu0 0.0
    %130 = vmatprep.subr.mxu0 0.0
    %131 = vmatpush1.msra.mxu0 0.0
    %132 = vmatprep.mubr.f32.mxu0 0.0
    %133 = vmatmul.mubr.f32.gmra.mrb[0].mxu0 %v66
    %v134 = vpop.f32.mrb[0].mxu0
    %v135 = vadd.f32 %v63, %v134
    %v136 = vpop.f32.mrb[0].mxu0
    %137 = vdwg.mxu0
    %v138 = vtanh.pop %v135
    %v139 = vadd.f32 %v138, 0.0
    %s140 = scalar_lea.vmem [#allocation2], 2
    %v141 = vld [vmem:[%s140] sm:$0x3]
    %v143 = vsel %vm64, %v138, 0
    %145 = vmatprep.subr.mxu0 0.0
    %146 = vmatpush1.msra.mxu0 %v59
    %147 = vmatprep.subr.mxu0 0.0
    %148 = vmatpush1.msra.mxu0 %v60
    %149 = vmatprep.subr.mxu0 0.0
    %150 = vmatpush1.msra.mxu0 %v61
    %151 = vmatprep.subr.mxu0 0.0
    %152 = vmatpush1.msra.mxu0 %v62
    %153 = vmatprep.subr.mxu0 0.0
    %154 = vmatpush1.msra.mxu0 0.0
    %155 = vmatprep.subr.mxu0 0.0
    %156 = vmatpush1.msra.mxu0 0.0
    %157 = vmatprep.subr.mxu0 0.0
    %158 = vmatpush1.msra.mxu0 0.0
    %159 = vmatprep.subr.mxu0 0.0
    %160 = vmatpush1.msra.mxu0 0.0
    %161 = vmatprep.subr.mxu0 0.0
    %162 = vmatpush1.msra.mxu0 0.0
    %163 = vmatprep.subr.mxu0 0.0
    %164 = vmatpush1.msra.mxu0 0.0
    %165 = vmatprep.subr.mxu0 0.0
    %166 = vmatpush1.msra.mxu0 0.0
    %167 = vmatprep.subr.mxu0 0.0
    %168 = vmatpush1.msra.mxu0 0.0
    %169 = vmatprep.subr.mxu0 0.0
    %170 = vmatpush1.msra.mxu0 0.0
    %171 = vmatprep.subr.mxu0 0.0
    %172 = vmatpush1.msra.mxu0 0.0
    %173 = vmatprep.subr.mxu0 0.0
    %174 = vmatpush1.msra.mxu0 0.0
    %175 = vmatprep.subr.mxu0 0.0
    %176 = vmatpush1.msra.mxu0 0.0
    %177 = vmatprep.subr.mxu0 0.0
    %178 = vmatpush1.msra.mxu0 0.0
    %179 = vmatprep.subr.mxu0 0.0
    %180 = vmatpush1.msra.mxu0 0.0
    %181 = vmatprep.subr.mxu0 0.0
    %182 = vmatpush1.msra.mxu0 0.0
    %183 = vmatprep.subr.mxu0 0.0
    %184 = vmatpush1.msra.mxu0 0.0
    %185 = vmatprep.subr.mxu0 0.0
    %186 = vmatpush1.msra.mxu0 0.0
    %187 = vmatprep.subr.mxu0 0.0
    %188 = vmatpush1.msra.mxu0 0.0
    %189 = vmatprep.subr.mxu0 0.0
    %190 = vmatpush1.msra.mxu0 0.0
    %191 = vmatprep.subr.mxu0 0.0
    %192 = vmatpush1.msra.mxu0 0.0
    %193 = vmatprep.subr.mxu0 0.0
    %194 = vmatpush1.msra.mxu0 0.0
    %195 = vmatprep.subr.mxu0 0.0
    %196 = vmatpush1.msra.mxu0 0.0
    %197 = vmatprep.subr.mxu0 0.0
    %198 = vmatpush1.msra.mxu0 0.0
    %199 = vmatprep.subr.mxu0 0.0
    %200 = vmatpush1.msra.mxu0 0.0
    %201 = vmatprep.subr.mxu0 0.0
    %202 = vmatpush1.msra.mxu0 0.0
    %203 = vmatprep.subr.mxu0 0.0
    %204 = vmatpush1.msra.mxu0 0.0
    %205 = vmatprep.subr.mxu0 0.0
    %206 = vmatpush1.msra.mxu0 0.0
    %207 = vmatprep.subr.mxu0 0.0
    %208 = vmatpush1.msra.mxu0 0.0
    %209 = vmatprep.mubr.f32.mxu0 0.0
    %210 = vmatmul.mubr.f32.gmra.mrb[0].mxu0 %v143
    %v211 = vpop.f32.mrb[0].mxu0
    %v212 = vadd.f32 %v141, %v211
    %v213 = vpop.f32.mrb[0].mxu0
    %214 = vdwg.mxu0
    %v215 = vtanh.pop %v212
    %v216 = vadd.f32 %v139, %v215
    %s217 = scalar_lea.vmem [#allocation2], 4
    %v218 = vld [vmem:[%s217] sm:$0x3]
    %v220 = vsel %vm64, %v215, 0
    %222 = vmatprep.subr.mxu0 0.0
    %223 = vmatpush1.msra.mxu0 %v59
    %224 = vmatprep.subr.mxu0 0.0
    %225 = vmatpush1.msra.mxu0 %v60
    %226 = vmatprep.subr.mxu0 0.0
    %227 = vmatpush1.msra.mxu0 %v61
    %228 = vmatprep.subr.mxu0 0.0
    %229 = vmatpush1.msra.mxu0 %v62
    %230 = vmatprep.subr.mxu0 0.0
    %231 = vmatpush1.msra.mxu0 0.0
    %232 = vmatprep.subr.mxu0 0.0
    %233 = vmatpush1.msra.mxu0 0.0
    %234 = vmatprep.subr.mxu0 0.0
    %235 = vmatpush1.msra.mxu0 0.0
    %236 = vmatprep.subr.mxu0 0.0
    %237 = vmatpush1.msra.mxu0 0.0
    %238 = vmatprep.subr.mxu0 0.0
    %239 = vmatpush1.msra.mxu0 0.0
    %240 = vmatprep.subr.mxu0 0.0
    %241 = vmatpush1.msra.mxu0 0.0
    %242 = vmatprep.subr.mxu0 0.0
    %243 = vmatpush1.msra.mxu0 0.0
    %244 = vmatprep.subr.mxu0 0.0
    %245 = vmatpush1.msra.mxu0 0.0
    %246 = vmatprep.subr.mxu0 0.0
    %247 = vmatpush1.msra.mxu0 0.0
    %248 = vmatprep.subr.mxu0 0.0
    %249 = vmatpush1.msra.mxu0 0.0
    %250 = vmatprep.subr.mxu0 0.0
    %251 = vmatpush1.msra.mxu0 0.0
    %252 = vmatprep.subr.mxu0 0.0
    %253 = vmatpush1.msra.mxu0 0.0
    %254 = vmatprep.subr.mxu0 0.0
    %255 = vmatpush1.msra.mxu0 0.0
    %256 = vmatprep.subr.mxu0 0.0
    %257 = vmatpush1.msra.mxu0 0.0
    %258 = vmatprep.subr.mxu0 0.0
    %259 = vmatpush1.msra.mxu0 0.0
    %260 = vmatprep.subr.mxu0 0.0
    %261 = vmatpush1.msra.mxu0 0.0
    %262 = vmatprep.subr.mxu0 0.0
    %263 = vmatpush1.msra.mxu0 0.0
    %264 = vmatprep.subr.mxu0 0.0
    %265 = vmatpush1.msra.mxu0 0.0
    %266 = vmatprep.subr.mxu0 0.0
    %267 = vmatpush1.msra.mxu0 0.0
    %268 = vmatprep.subr.mxu0 0.0
    %269 = vmatpush1.msra.mxu0 0.0
    %270 = vmatprep.subr.mxu0 0.0
    %271 = vmatpush1.msra.mxu0 0.0
    %272 = vmatprep.subr.mxu0 0.0
    %273 = vmatpush1.msra.mxu0 0.0
    %274 = vmatprep.subr.mxu0 0.0
    %275 = vmatpush1.msra.mxu0 0.0
    %276 = vmatprep.subr.mxu0 0.0
    %277 = vmatpush1.msra.mxu0 0.0
    %278 = vmatprep.subr.mxu0 0.0
    %279 = vmatpush1.msra.mxu0 0.0
    %280 = vmatprep.subr.mxu0 0.0
    %281 = vmatpush1.msra.mxu0 0.0
    %282 = vmatprep.subr.mxu0 0.0
    %283 = vmatpush1.msra.mxu0 0.0
    %284 = vmatprep.subr.mxu0 0.0
    %285 = vmatpush1.msra.mxu0 0.0
    %286 = vmatprep.mubr.f32.mxu0 0.0
    %287 = vmatmul.mubr.f32.gmra.mrb[0].mxu0 %v220
    %v288 = vpop.f32.mrb[0].mxu0
    %v289 = vadd.f32 %v218, %v288
    %v290 = vpop.f32.mrb[0].mxu0
    %291 = vdwg.mxu0
    %v292 = vtanh.pop %v289
    %v293 = vadd.f32 %v216, %v292
    %s294 = scalar_lea.vmem [#allocation2], 6
    %v295 = vld [vmem:[%s294] sm:$0x3]
    %v297 = vsel %vm64, %v292, 0
    %299 = vmatprep.subr.mxu0 0.0
    %300 = vmatpush1.msra.mxu0 %v59
    %301 = vmatprep.subr.mxu0 0.0
    %302 = vmatpush1.msra.mxu0 %v60
    %303 = vmatprep.subr.mxu0 0.0
    %304 = vmatpush1.msra.mxu0 %v61
    %305 = vmatprep.subr.mxu0 0.0
    %306 = vmatpush1.msra.mxu0 %v62
    %307 = vmatprep.subr.mxu0 0.0
    %308 = vmatpush1.msra.mxu0 0.0
    %309 = vmatprep.subr.mxu0 0.0
    %310 = vmatpush1.msra.mxu0 0.0
    %311 = vmatprep.subr.mxu0 0.0
    %312 = vmatpush1.msra.mxu0 0.0
    %313 = vmatprep.subr.mxu0 0.0
    %314 = vmatpush1.msra.mxu0 0.0
    %315 = vmatprep.subr.mxu0 0.0
    %316 = vmatpush1.msra.mxu0 0.0
    %317 = vmatprep.subr.mxu0 0.0
    %318 = vmatpush1.msra.mxu0 0.0
    %319 = vmatprep.subr.mxu0 0.0
    %320 = vmatpush1.msra.mxu0 0.0
    %321 = vmatprep.subr.mxu0 0.0
    %322 = vmatpush1.msra.mxu0 0.0
    %323 = vmatprep.subr.mxu0 0.0
    %324 = vmatpush1.msra.mxu0 0.0
    %325 = vmatprep.subr.mxu0 0.0
    %326 = vmatpush1.msra.mxu0 0.0
    %327 = vmatprep.subr.mxu0 0.0
    %328 = vmatpush1.msra.mxu0 0.0
    %329 = vmatprep.subr.mxu0 0.0
    %330 = vmatpush1.msra.mxu0 0.0
    %331 = vmatprep.subr.mxu0 0.0
    %332 = vmatpush1.msra.mxu0 0.0
    %333 = vmatprep.subr.mxu0 0.0
    %334 = vmatpush1.msra.mxu0 0.0
    %335 = vmatprep.subr.mxu0 0.0
    %336 = vmatpush1.msra.mxu0 0.0
    %337 = vmatprep.subr.mxu0 0.0
    %338 = vmatpush1.msra.mxu0 0.0
    %339 = vmatprep.subr.mxu0 0.0
    %340 = vmatpush1.msra.mxu0 0.0
    %341 = vmatprep.subr.mxu0 0.0
    %342 = vmatpush1.msra.mxu0 0.0
    %343 = vmatprep.subr.mxu0 0.0
    %344 = vmatpush1.msra.mxu0 0.0
    %345 = vmatprep.subr.mxu0 0.0
    %346 = vmatpush1.msra.mxu0 0.0
    %347 = vmatprep.subr.mxu0 0.0
    %348 = vmatpush1.msra.mxu0 0.0
    %349 = vmatprep.subr.mxu0 0.0
    %350 = vmatpush1.msra.mxu0 0.0
    %351 = vmatprep.subr.mxu0 0.0
    %352 = vmatpush1.msra.mxu0 0.0
    %353 = vmatprep.subr.mxu0 0.0
    %354 = vmatpush1.msra.mxu0 0.0
    %355 = vmatprep.subr.mxu0 0.0
    %356 = vmatpush1.msra.mxu0 0.0
    %357 = vmatprep.subr.mxu0 0.0
    %358 = vmatpush1.msra.mxu0 0.0
    %359 = vmatprep.subr.mxu0 0.0
    %360 = vmatpush1.msra.mxu0 0.0
    %361 = vmatprep.subr.mxu0 0.0
    %362 = vmatpush1.msra.mxu0 0.0
    %363 = vmatprep.mubr.f32.mxu0 0.0
    %364 = vmatmul.mubr.f32.gmra.mrb[0].mxu0 %v297
    %v365 = vpop.f32.mrb[0].mxu0
    %v366 = vadd.f32 %v295, %v365
    %v367 = vpop.f32.mrb[0].mxu0
    %368 = vdwg.mxu0
    %v369 = vtanh.pop %v366
    %v370 = vadd.f32 %v293, %v369
    %s371 = scalar_lea.vmem [#allocation2], 8
    %v372 = vld [vmem:[%s371] sm:$0x3]
    %v374 = vsel %vm64, %v369, 0
    %376 = vmatprep.subr.mxu0 0.0
    %377 = vmatpush1.msra.mxu0 %v59
    %378 = vmatprep.subr.mxu0 0.0
    %379 = vmatpush1.msra.mxu0 %v60
    %380 = vmatprep.subr.mxu0 0.0
    %381 = vmatpush1.msra.mxu0 %v61
    %382 = vmatprep.subr.mxu0 0.0
    %383 = vmatpush1.msra.mxu0 %v62
    %384 = vmatprep.subr.mxu0 0.0
    %385 = vmatpush1.msra.mxu0 0.0
    %386 = vmatprep.subr.mxu0 0.0
    %387 = vmatpush1.msra.mxu0 0.0
    %388 = vmatprep.subr.mxu0 0.0
    %389 = vmatpush1.msra.mxu0 0.0
    %390 = vmatprep.subr.mxu0 0.0
    %391 = vmatpush1.msra.mxu0 0.0
    %392 = vmatprep.subr.mxu0 0.0
    %393 = vmatpush1.msra.mxu0 0.0
    %394 = vmatprep.subr.mxu0 0.0
    %395 = vmatpush1.msra.mxu0 0.0
    %396 = vmatprep.subr.mxu0 0.0
    %397 = vmatpush1.msra.mxu0 0.0
    %398 = vmatprep.subr.mxu0 0.0
    %399 = vmatpush1.msra.mxu0 0.0
    %400 = vmatprep.subr.mxu0 0.0
    %401 = vmatpush1.msra.mxu0 0.0
    %402 = vmatprep.subr.mxu0 0.0
    %403 = vmatpush1.msra.mxu0 0.0
    %404 = vmatprep.subr.mxu0 0.0
    %405 = vmatpush1.msra.mxu0 0.0
    %406 = vmatprep.subr.mxu0 0.0
    %407 = vmatpush1.msra.mxu0 0.0
    %408 = vmatprep.subr.mxu0 0.0
    %409 = vmatpush1.msra.mxu0 0.0
    %410 = vmatprep.subr.mxu0 0.0
    %411 = vmatpush1.msra.mxu0 0.0
    %412 = vmatprep.subr.mxu0 0.0
    %413 = vmatpush1.msra.mxu0 0.0
    %414 = vmatprep.subr.mxu0 0.0
    %415 = vmatpush1.msra.mxu0 0.0
    %416 = vmatprep.subr.mxu0 0.0
    %417 = vmatpush1.msra.mxu0 0.0
    %418 = vmatprep.subr.mxu0 0.0
    %419 = vmatpush1.msra.mxu0 0.0
    %420 = vmatprep.subr.mxu0 0.0
    %421 = vmatpush1.msra.mxu0 0.0
    %422 = vmatprep.subr.mxu0 0.0
    %423 = vmatpush1.msra.mxu0 0.0
    %424 = vmatprep.subr.mxu0 0.0
    %425 = vmatpush1.msra.mxu0 0.0
    %426 = vmatprep.subr.mxu0 0.0
    %427 = vmatpush1.msra.mxu0 0.0
    %428 = vmatprep.subr.mxu0 0.0
    %429 = vmatpush1.msra.mxu0 0.0
    %430 = vmatprep.subr.mxu0 0.0
    %431 = vmatpush1.msra.mxu0 0.0
    %432 = vmatprep.subr.mxu0 0.0
    %433 = vmatpush1.msra.mxu0 0.0
    %434 = vmatprep.subr.mxu0 0.0
    %435 = vmatpush1.msra.mxu0 0.0
    %436 = vmatprep.subr.mxu0 0.0
    %437 = vmatpush1.msra.mxu0 0.0
    %438 = vmatprep.subr.mxu0 0.0
    %439 = vmatpush1.msra.mxu0 0.0
    %440 = vmatprep.mubr.f32.mxu0 0.0
    %441 = vmatmul.mubr.f32.gmra.mrb[0].mxu0 %v374
    %v442 = vpop.f32.mrb[0].mxu0
    %v443 = vadd.f32 %v372, %v442
    %v444 = vpop.f32.mrb[0].mxu0
    %445 = vdwg.mxu0
    %v446 = vtanh.pop %v443
    %v447 = vadd.f32 %v370, %v446
    %s448 = scalar_lea.vmem [#allocation2], 10
    %v449 = vld [vmem:[%s448] sm:$0x3]
    %v451 = vsel %vm64, %v446, 0
    %453 = vmatprep.subr.mxu0 0.0
    %454 = vmatpush1.msra.mxu0 %v59
    %455 = vmatprep.subr.mxu0 0.0
    %456 = vmatpush1.msra.mxu0 %v60
    %457 = vmatprep.subr.mxu0 0.0
    %458 = vmatpush1.msra.mxu0 %v61
    %459 = vmatprep.subr.mxu0 0.0
    %460 = vmatpush1.msra.mxu0 %v62
    %461 = vmatprep.subr.mxu0 0.0
    %462 = vmatpush1.msra.mxu0 0.0
    %463 = vmatprep.subr.mxu0 0.0
    %464 = vmatpush1.msra.mxu0 0.0
    %465 = vmatprep.subr.mxu0 0.0
    %466 = vmatpush1.msra.mxu0 0.0
    %467 = vmatprep.subr.mxu0 0.0
    %468 = vmatpush1.msra.mxu0 0.0
    %469 = vmatprep.subr.mxu0 0.0
    %470 = vmatpush1.msra.mxu0 0.0
    %471 = vmatprep.subr.mxu0 0.0
    %472 = vmatpush1.msra.mxu0 0.0
    %473 = vmatprep.subr.mxu0 0.0
    %474 = vmatpush1.msra.mxu0 0.0
    %475 = vmatprep.subr.mxu0 0.0
    %476 = vmatpush1.msra.mxu0 0.0
    %477 = vmatprep.subr.mxu0 0.0
    %478 = vmatpush1.msra.mxu0 0.0
    %479 = vmatprep.subr.mxu0 0.0
    %480 = vmatpush1.msra.mxu0 0.0
    %481 = vmatprep.subr.mxu0 0.0
    %482 = vmatpush1.msra.mxu0 0.0
    %483 = vmatprep.subr.mxu0 0.0
    %484 = vmatpush1.msra.mxu0 0.0
    %485 = vmatprep.subr.mxu0 0.0
    %486 = vmatpush1.msra.mxu0 0.0
    %487 = vmatprep.subr.mxu0 0.0
    %488 = vmatpush1.msra.mxu0 0.0
    %489 = vmatprep.subr.mxu0 0.0
    %490 = vmatpush1.msra.mxu0 0.0
    %491 = vmatprep.subr.mxu0 0.0
    %492 = vmatpush1.msra.mxu0 0.0
    %493 = vmatprep.subr.mxu0 0.0
    %494 = vmatpush1.msra.mxu0 0.0
    %495 = vmatprep.subr.mxu0 0.0
    %496 = vmatpush1.msra.mxu0 0.0
    %497 = vmatprep.subr.mxu0 0.0
    %498 = vmatpush1.msra.mxu0 0.0
    %499 = vmatprep.subr.mxu0 0.0
    %500 = vmatpush1.msra.mxu0 0.0
    %501 = vmatprep.subr.mxu0 0.0
    %502 = vmatpush1.msra.mxu0 0.0
    %503 = vmatprep.subr.mxu0 0.0
    %504 = vmatpush1.msra.mxu0 0.0
    %505 = vmatprep.subr.mxu0 0.0
    %506 = vmatpush1.msra.mxu0 0.0
    %507 = vmatprep.subr.mxu0 0.0
    %508 = vmatpush1.msra.mxu0 0.0
    %509 = vmatprep.subr.mxu0 0.0
    %510 = vmatpush1.msra.mxu0 0.0
    %511 = vmatprep.subr.mxu0 0.0
    %512 = vmatpush1.msra.mxu0 0.0
    %513 = vmatprep.subr.mxu0 0.0
    %514 = vmatpush1.msra.mxu0 0.0
    %515 = vmatprep.subr.mxu0 0.0
    %516 = vmatpush1.msra.mxu0 0.0
    %517 = vmatprep.mubr.f32.mxu0 0.0
    %518 = vmatmul.mubr.f32.gmra.mrb[0].mxu0 %v451
    %v519 = vpop.f32.mrb[0].mxu0
    %v520 = vadd.f32 %v449, %v519
    %v521 = vpop.f32.mrb[0].mxu0
    %522 = vdwg.mxu0
    %v523 = vtanh.pop %v520
    %v524 = vadd.f32 %v447, %v523
    %s525 = scalar_lea.vmem [#allocation2], 12
    %v526 = vld [vmem:[%s525] sm:$0x3]
    %v528 = vsel %vm64, %v523, 0
    %530 = vmatprep.subr.mxu0 0.0
    %531 = vmatpush1.msra.mxu0 %v59
    %532 = vmatprep.subr.mxu0 0.0
    %533 = vmatpush1.msra.mxu0 %v60
    %534 = vmatprep.subr.mxu0 0.0
    %535 = vmatpush1.msra.mxu0 %v61
    %536 = vmatprep.subr.mxu0 0.0
    %537 = vmatpush1.msra.mxu0 %v62
    %538 = vmatprep.subr.mxu0 0.0
    %539 = vmatpush1.msra.mxu0 0.0
    %540 = vmatprep.subr.mxu0 0.0
    %541 = vmatpush1.msra.mxu0 0.0
    %542 = vmatprep.subr.mxu0 0.0
    %543 = vmatpush1.msra.mxu0 0.0
    %544 = vmatprep.subr.mxu0 0.0
    %545 = vmatpush1.msra.mxu0 0.0
    %546 = vmatprep.subr.mxu0 0.0
    %547 = vmatpush1.msra.mxu0 0.0
    %548 = vmatprep.subr.mxu0 0.0
    %549 = vmatpush1.msra.mxu0 0.0
    %550 = vmatprep.subr.mxu0 0.0
    %551 = vmatpush1.msra.mxu0 0.0
    %552 = vmatprep.subr.mxu0 0.0
    %553 = vmatpush1.msra.mxu0 0.0
    %554 = vmatprep.subr.mxu0 0.0
    %555 = vmatpush1.msra.mxu0 0.0
    %556 = vmatprep.subr.mxu0 0.0
    %557 = vmatpush1.msra.mxu0 0.0
    %558 = vmatprep.subr.mxu0 0.0
    %559 = vmatpush1.msra.mxu0 0.0
    %560 = vmatprep.subr.mxu0 0.0
    %561 = vmatpush1.msra.mxu0 0.0
    %562 = vmatprep.subr.mxu0 0.0
    %563 = vmatpush1.msra.mxu0 0.0
    %564 = vmatprep.subr.mxu0 0.0
    %565 = vmatpush1.msra.mxu0 0.0
    %566 = vmatprep.subr.mxu0 0.0
    %567 = vmatpush1.msra.mxu0 0.0
    %568 = vmatprep.subr.mxu0 0.0
    %569 = vmatpush1.msra.mxu0 0.0
    %570 = vmatprep.subr.mxu0 0.0
    %571 = vmatpush1.msra.mxu0 0.0
    %572 = vmatprep.subr.mxu0 0.0
    %573 = vmatpush1.msra.mxu0 0.0
    %574 = vmatprep.subr.mxu0 0.0
    %575 = vmatpush1.msra.mxu0 0.0
    %576 = vmatprep.subr.mxu0 0.0
    %577 = vmatpush1.msra.mxu0 0.0
    %578 = vmatprep.subr.mxu0 0.0
    %579 = vmatpush1.msra.mxu0 0.0
    %580 = vmatprep.subr.mxu0 0.0
    %581 = vmatpush1.msra.mxu0 0.0
    %582 = vmatprep.subr.mxu0 0.0
    %583 = vmatpush1.msra.mxu0 0.0
    %584 = vmatprep.subr.mxu0 0.0
    %585 = vmatpush1.msra.mxu0 0.0
    %586 = vmatprep.subr.mxu0 0.0
    %587 = vmatpush1.msra.mxu0 0.0
    %588 = vmatprep.subr.mxu0 0.0
    %589 = vmatpush1.msra.mxu0 0.0
    %590 = vmatprep.subr.mxu0 0.0
    %591 = vmatpush1.msra.mxu0 0.0
    %592 = vmatprep.subr.mxu0 0.0
    %593 = vmatpush1.msra.mxu0 0.0
    %594 = vmatprep.mubr.f32.mxu0 0.0
    %595 = vmatmul.mubr.f32.gmra.mrb[0].mxu0 %v528
    %v596 = vpop.f32.mrb[0].mxu0
    %v597 = vadd.f32 %v526, %v596
    %v598 = vpop.f32.mrb[0].mxu0
    %599 = vdwg.mxu0
    %v600 = vtanh.pop %v597
    %v601 = vadd.f32 %v524, %v600
    %s602 = scalar_lea.vmem [#allocation2], 14
    %v603 = vld [vmem:[%s602] sm:$0x3]
    %v605 = vsel %vm64, %v600, 0
    %607 = vmatprep.subr.mxu0 0.0
    %608 = vmatpush1.msra.mxu0 %v59
    %609 = vmatprep.subr.mxu0 0.0
    %610 = vmatpush1.msra.mxu0 %v60
    %611 = vmatprep.subr.mxu0 0.0
    %612 = vmatpush1.msra.mxu0 %v61
    %613 = vmatprep.subr.mxu0 0.0
    %614 = vmatpush1.msra.mxu0 %v62
    %615 = vmatprep.subr.mxu0 0.0
    %616 = vmatpush1.msra.mxu0 0.0
    %617 = vmatprep.subr.mxu0 0.0
    %618 = vmatpush1.msra.mxu0 0.0
    %619 = vmatprep.subr.mxu0 0.0
    %620 = vmatpush1.msra.mxu0 0.0
    %621 = vmatprep.subr.mxu0 0.0
    %622 = vmatpush1.msra.mxu0 0.0
    %623 = vmatprep.subr.mxu0 0.0
    %624 = vmatpush1.msra.mxu0 0.0
    %625 = vmatprep.subr.mxu0 0.0
    %626 = vmatpush1.msra.mxu0 0.0
    %627 = vmatprep.subr.mxu0 0.0
    %628 = vmatpush1.msra.mxu0 0.0
    %629 = vmatprep.subr.mxu0 0.0
    %630 = vmatpush1.msra.mxu0 0.0
    %631 = vmatprep.subr.mxu0 0.0
    %632 = vmatpush1.msra.mxu0 0.0
    %633 = vmatprep.subr.mxu0 0.0
    %634 = vmatpush1.msra.mxu0 0.0
    %635 = vmatprep.subr.mxu0 0.0
    %636 = vmatpush1.msra.mxu0 0.0
    %637 = vmatprep.subr.mxu0 0.0
    %638 = vmatpush1.msra.mxu0 0.0
    %639 = vmatprep.subr.mxu0 0.0
    %640 = vmatpush1.msra.mxu0 0.0
    %641 = vmatprep.subr.mxu0 0.0
    %642 = vmatpush1.msra.mxu0 0.0
    %643 = vmatprep.subr.mxu0 0.0
    %644 = vmatpush1.msra.mxu0 0.0
    %645 = vmatprep.subr.mxu0 0.0
    %646 = vmatpush1.msra.mxu0 0.0
    %647 = vmatprep.subr.mxu0 0.0
    %648 = vmatpush1.msra.mxu0 0.0
    %649 = vmatprep.subr.mxu0 0.0
    %650 = vmatpush1.msra.mxu0 0.0
    %651 = vmatprep.subr.mxu0 0.0
    %652 = vmatpush1.msra.mxu0 0.0
    %653 = vmatprep.subr.mxu0 0.0
    %654 = vmatpush1.msra.mxu0 0.0
    %655 = vmatprep.subr.mxu0 0.0
    %656 = vmatpush1.msra.mxu0 0.0
    %657 = vmatprep.subr.mxu0 0.0
    %658 = vmatpush1.msra.mxu0 0.0
    %659 = vmatprep.subr.mxu0 0.0
    %660 = vmatpush1.msra.mxu0 0.0
    %661 = vmatprep.subr.mxu0 0.0
    %662 = vmatpush1.msra.mxu0 0.0
    %663 = vmatprep.subr.mxu0 0.0
    %664 = vmatpush1.msra.mxu0 0.0
    %665 = vmatprep.subr.mxu0 0.0
    %666 = vmatpush1.msra.mxu0 0.0
    %667 = vmatprep.subr.mxu0 0.0
    %668 = vmatpush1.msra.mxu0 0.0
    %669 = vmatprep.subr.mxu0 0.0
    %670 = vmatpush1.msra.mxu0 0.0
    %671 = vmatprep.mubr.f32.mxu0 0.0
    %672 = vmatmul.mubr.f32.gmra.mrb[0].mxu0 %v605
    %v673 = vpop.f32.mrb[0].mxu0
    %v674 = vadd.f32 %v603, %v673
    %v675 = vpop.f32.mrb[0].mxu0
    %676 = vdwg.mxu0
    %v677 = vtanh.pop %v674
    %v678 = vadd.f32 %v601, %v677
    %v679 = vld [vmem:[#allocation7] sm:$0xff]
    %v680 = vld [vmem:[#allocation7 + $0x8] sm:$0xff]
    %v681 = vld [vmem:[#allocation7 + $0x10] sm:$0xff]
    %v682 = vld [vmem:[#allocation7 + $0x18] sm:$0xff]
    %v683 = vld [vmem:[%s3] sm:$0x1]
    %v684 = vmul.f32 %v683, 8.0
    %v686 = vlaneseq
    %v687 = vshrl.u32 %v686, 7
    %v688 = vsub.s32 0, %v687
    %v689 = vrot.slane %v684, %v688
    %v692 = vsel %vm64, %v678, 0
    %694 = vmatprep.subr.mxu0 0.0
    %695 = vmatpush1.msra.mxu0 %v679
    %696 = vmatprep.subr.mxu0 0.0
    %697 = vmatpush1.msra.mxu0 %v680
    %698 = vmatprep.subr.mxu0 0.0
    %699 = vmatpush1.msra.mxu0 %v681
    %700 = vmatprep.subr.mxu0 0.0
    %701 = vmatpush1.msra.mxu0 %v682
    %702 = vmatprep.subr.mxu0 0.0
    %703 = vmatpush1.msra.mxu0 0.0
    %704 = vmatprep.subr.mxu0 0.0
    %705 = vmatpush1.msra.mxu0 0.0
    %706 = vmatprep.subr.mxu0 0.0
    %707 = vmatpush1.msra.mxu0 0.0
    %708 = vmatprep.subr.mxu0 0.0
    %709 = vmatpush1.msra.mxu0 0.0
    %710 = vmatprep.subr.mxu0 0.0
    %711 = vmatpush1.msra.mxu0 0.0
    %712 = vmatprep.subr.mxu0 0.0
    %713 = vmatpush1.msra.mxu0 0.0
    %714 = vmatprep.subr.mxu0 0.0
    %715 = vmatpush1.msra.mxu0 0.0
    %716 = vmatprep.subr.mxu0 0.0
    %717 = vmatpush1.msra.mxu0 0.0
    %718 = vmatprep.subr.mxu0 0.0
    %719 = vmatpush1.msra.mxu0 0.0
    %720 = vmatprep.subr.mxu0 0.0
    %721 = vmatpush1.msra.mxu0 0.0
    %722 = vmatprep.subr.mxu0 0.0
    %723 = vmatpush1.msra.mxu0 0.0
    %724 = vmatprep.subr.mxu0 0.0
    %725 = vmatpush1.msra.mxu0 0.0
    %726 = vmatprep.subr.mxu0 0.0
    %727 = vmatpush1.msra.mxu0 0.0
    %728 = vmatprep.subr.mxu0 0.0
    %729 = vmatpush1.msra.mxu0 0.0
    %730 = vmatprep.subr.mxu0 0.0
    %731 = vmatpush1.msra.mxu0 0.0
    %732 = vmatprep.subr.mxu0 0.0
    %733 = vmatpush1.msra.mxu0 0.0
    %734 = vmatprep.subr.mxu0 0.0
    %735 = vmatpush1.msra.mxu0 0.0
    %736 = vmatprep.subr.mxu0 0.0
    %737 = vmatpush1.msra.mxu0 0.0
    %738 = vmatprep.subr.mxu0 0.0
    %739 = vmatpush1.msra.mxu0 0.0
    %740 = vmatprep.subr.mxu0 0.0
    %741 = vmatpush1.msra.mxu0 0.0
    %742 = vmatprep.subr.mxu0 0.0
    %743 = vmatpush1.msra.mxu0 0.0
    %744 = vmatprep.subr.mxu0 0.0
    %745 = vmatpush1.msra.mxu0 0.0
    %746 = vmatprep.subr.mxu0 0.0
    %747 = vmatpush1.msra.mxu0 0.0
    %748 = vmatprep.subr.mxu0 0.0
    %749 = vmatpush1.msra.mxu0 0.0
    %750 = vmatprep.subr.mxu0 0.0
    %751 = vmatpush1.msra.mxu0 0.0
    %752 = vmatprep.subr.mxu0 0.0
    %753 = vmatpush1.msra.mxu0 0.0
    %754 = vmatprep.subr.mxu0 0.0
    %755 = vmatpush1.msra.mxu0 0.0
    %756 = vmatprep.subr.mxu0 0.0
    %757 = vmatpush1.msra.mxu0 0.0
    %758 = vmatprep.mubr.f32.mxu0 0.0
    %759 = vmatmul.mubr.f32.gmra.mrb[0].mxu0 %v692
    %v760 = vpop.f32.mrb[0].mxu0
    %v761 = vadd.f32 %v689, %v760
    %v762 = vpop.f32.mrb[0].mxu0
    %763 = vdwg.mxu0
    %v764 = vlaneseq
    %v765 = vand.u32 %v764, 127
    %vm766 = vcmp.lt.s32.totalorder %v765, 5
    %v767 = vsel %vm766, %v761, -1e+30
    %vm768 = vcmask 1041408
    %v769 = vsel %vm768, %v767, -inf
    %770 = vmax.xlane.f32.xlu0 %v769
    %v771 = vpop.xlane.xlu0 %770
    %v772 = vsub.f32 %v767, %v771
    %v773 = vmul.f32 %v772, 1.442695
    %v774 = vpow.pop %v773
    %v775 = vsel %vm768, %v774, 0.0
    %776 = vadd.xlane.f32.xlu0 %v775
    %v777 = vpop.xlane.xlu0 %776
    %v778 = vlog2.pop %v777
    %v779 = vmul.f32 %v778, 0.6931472
    %v780 = vadd.f32 %v779, %v771
    %v781 = vsub.f32 %v761, %v780
    %782 = vst [vmem:[#allocation8] sm:$0x3] %v781
    // Predicated region
    $region30: #{tpu_custom_call.1} parent=1 // pred_check
      _
    $region31: #{tpu_custom_call.1} parent=1 // pred_check_branch
      %784 = sbr.rel (0) target = $region33
    $region32: #{tpu_custom_call.1} parent=1 // pred_region
      %s786 = ssub.s32 32, 32
      %787 = vsyncadd [#allocation4], %s786
      %s789 = sshll.u32 [#allocation8], 4
      %s790 = int_to_ptr.vmem [resolvable:$true] %s789
      %792 = dma.vmem_to_hbm [thread:$0]  %s790, 32, %s4, [#allocation4]
    $region33: #{tpu_custom_call.1} parent=1 // pred_fallthru
      _
    // Predicated region
    $region34: #{tpu_custom_call.1} parent=1 // pred_check
      _
    $region35: #{tpu_custom_call.1} parent=1 // pred_check_branch
      %794 = sbr.rel (0) target = $region37
    $region36: #{tpu_custom_call.1} parent=1 // pred_region
      %795 = dma.done [#allocation4], 32
    $region37: #{tpu_custom_call.1} parent=1 // pred_fallthru
      _
    %796 = vsyncpa [#allocation3], 1
    %797 = vsyncpa [#allocation6], 1
    %798 = vsyncpa [#allocation4], 1

</llo_original>
